<compile_context>
chip_gen: v5e
topology: v5e:2x2
jax: 0.10.0
libtpu: 0.0.40
codegen_flags: <defaults>
</compile_context>

<pallas_src>
import functools

import jax
import jax.numpy as jnp
from jax.experimental import pallas as pl
from jax.experimental.pallas import tpu as pltpu


def _cdiv(a: int, b: int) -> int:
    return (a + b - 1) // b


def _round_up(a: int, m: int) -> int:
    return _cdiv(a, m) * m


def _weighted_sum_kernel(x_ref, w_ref, o_ref, acc_ref, *,
                         ts, s_total, n_chunks, rem, need_mask):
    """One (TC, TS) x-tile against a (TCW, TS) weight tile (TCW in {1, TC})."""
    k = pl.program_id(2)                 # spatial reduction axis (last grid axis)

    @pl.when(k == 0)
    def _():
        acc_ref[...] = jnp.zeros_like(acc_ref)

    lane_base = k * ts

    # Lane-parallel accumulation: 128-wide VPU adds per chunk; a (1, 128)
    # weight row broadcasts against (TC, 128) for free on the VPU.
    partial = None
    for j in range(n_chunks):
        lo = j * 128
        pj = (x_ref[:, lo:lo + 128].astype(jnp.float32)
              * w_ref[:, lo:lo + 128].astype(jnp.float32))
        if need_mask:
            lane = jax.lax.broadcasted_iota(jnp.int32, pj.shape, 1)
            pj = jnp.where(lane_base + lo + lane < s_total, pj, 0.0)
        partial = pj if partial is None else partial + pj
    if partial is not None:
        acc_ref[...] += partial

    if rem:   # TS not a multiple of 128 (only happens when TS == S, one k step)
        lo = n_chunks * 128
        pr = (x_ref[:, lo:].astype(jnp.float32)
              * w_ref[:, lo:].astype(jnp.float32))
        if need_mask:
            lane = jax.lax.broadcasted_iota(jnp.int32, pr.shape, 1)
            pr = jnp.where(lane_base + lo + lane < s_total, pr, 0.0)
        acc_ref[:, 0:1] += jnp.sum(pr, axis=1, keepdims=True)

    @pl.when(k == pl.num_programs(2) - 1)
    def _():
        # Single cross-lane (XLU) reduce per output block.
        o_ref[...] = jnp.sum(acc_ref[...], axis=1,
                             keepdims=True).astype(o_ref.dtype)


def weighted_sum_2d(x, weights):
    """Pallas WeightedSum2d forward: returns (B, C, 1, 1)."""
    B, C, H, W = x.shape
    WB, WC, WH, WW = weights.shape
    assert WH == H and WW == W, (
        "err: h, w of tensors x and weights must be the same.")
    assert WB in (1, B) and WC in (1, C), "weights must broadcast against x"

    S = H * W
    x3 = x.reshape(B, C, S)              # contiguous collapses: metadata only
    w3 = weights.reshape(WB, WC, S)
    out_dtype = jnp.result_type(x.dtype, weights.dtype)

    # dtype-native sublane multiple: 8 (f32) / 16 (bf16) / 32 (int8, fp8)
    sub = max(8, 32 // jnp.dtype(x.dtype).itemsize)

    # --- spatial (lane / reduction) tiling ----------------------------------
    TS_MAX = 4096
    if S <= TS_MAX:
        TS, grid_k = S, 1                # full spatial extent in one block
    else:
        TS = TS_MAX                      # multiple of 128
        grid_k = _cdiv(S, TS)
    need_mask = (grid_k * TS != S)       # mask OOB lanes of the last k block
    n_chunks, rem = TS // 128, TS % 128

    # --- channel (row / parallel) tiling ------------------------------------
    TC_MAX = 256
    if C <= TC_MAX:
        TC, grid_c = C, 1
    else:
        TC = TC_MAX                      # multiple of every sublane req.
        grid_c = _cdiv(C, TC)
    # v7x megacore: guarantee >= 2 parallel blocks when B == 1 (layout permitting).
    if B == 1 and grid_c == 1 and C >= 2 * sub:
        TC = _round_up(_cdiv(C, 2), sub)
        grid_c = _cdiv(C, TC)

    TCW = TC if WC == C else 1
    w_b_full = (WB == B)
    w_c_full = (WC == C)

    def x_index_map(b, c, k):
        return (b, c, k)

    def w_index_map(b, c, k):
        return (b if w_b_full else 0, c if w_c_full else 0, k)

    def o_index_map(b, c, k):
        return (b, c, 0)

    kernel = functools.partial(
        _weighted_sum_kernel, ts=TS, s_total=S,
        n_chunks=n_chunks, rem=rem, need_mask=need_mask)

    cost = pl.CostEstimate(
        flops=2 * B * C * S,             # one mul + one add per element
        transcendentals=0,
        bytes_accessed=(x3.size * jnp.dtype(x.dtype).itemsize
                        + w3.size * jnp.dtype(weights.dtype).itemsize
                        + B * C * jnp.dtype(out_dtype).itemsize),
    )

    out = pl.pallas_call(
        kernel,
        out_shape=jax.ShapeDtypeStruct((B, C, 1), out_dtype),
        grid_spec=pltpu.PrefetchScalarGridSpec(
            num_scalar_prefetch=0,
            grid=(B, grid_c, grid_k),
            in_specs=[
                pl.BlockSpec((None, TC, TS), x_index_map),
                pl.BlockSpec((None, TCW, TS), w_index_map),
            ],
            out_specs=pl.BlockSpec((None, TC, 1), o_index_map),
            scratch_shapes=[pltpu.VMEM((TC, 128), jnp.float32)],
        ),
        compiler_params=pltpu.CompilerParams(
            dimension_semantics=("parallel", "parallel", "arbitrary"),
            vmem_limit_bytes=48 * 1024 * 1024,
        ),
        cost_estimate=cost,
    )(x3, w3)

    return out.reshape(B, C, 1, 1)


if __name__ == "__main__":
    key = jax.random.PRNGKey(0)
    k_x, k_w = jax.random.split(key, 2)

    # Shapes implied by the module's forward: a feature map and a per-location
    # (attention) weight map sharing the same spatial extent.
    B, C, H, W = 2, 4, 16, 16
    x = jax.random.normal(k_x, (B, C, H, W), dtype=jnp.float32)
    weights = jax.random.normal(k_w, (B, 1, H, W), dtype=jnp.float32)

    out = weighted_sum_2d(x, weights)
    jax.block_until_ready(out)

    # Pure-JAX reference of the PyTorch forward.
    ref = jnp.sum(x * weights, axis=(2, 3)).reshape(B, C, 1, 1)
    assert out.shape == (B, C, 1, 1)
    assert jnp.allclose(out, ref, atol=1e-5, rtol=1e-5)

    print("KERNEL_OK")
</pallas_src>

<mosaic_0001>
module attributes {stable_mosaic.version = 11 : i64} {
  func.func @_weighted_sum_kernel(%arg0: i32, %arg1: i32, %arg2: i32, %arg3: memref<1x4x256xf32, #tpu.memory_space<vmem>>, %arg4: memref<1x1x256xf32, #tpu.memory_space<vmem>>, %arg5: memref<1x4x1xf32, #tpu.memory_space<vmem>>, %arg6: memref<4x128xf32, #tpu.memory_space<vmem>>) attributes {dimension_semantics = [#tpu.dimension_semantics<parallel>, #tpu.dimension_semantics<parallel>, #tpu.dimension_semantics<arbitrary>], iteration_bounds = array<i64: 2, 1, 1>, scalar_prefetch = 0 : i64, scratch_operands = 1 : i64, tpu.core_type = #tpu.core_type<tc>, window_params = [{transform_indices = @transform_0, window_bounds = array<i64: 1, 4, 256>}, {transform_indices = @transform_1, window_bounds = array<i64: 1, 1, 256>}, {transform_indices = @transform_2, window_bounds = array<i64: 1, 4, 1>}]} {
    %c0_i32 = arith.constant 0 : i32
    %0 = arith.cmpi eq, %arg2, %c0_i32 : i32
    %1 = arith.extui %0 : i1 to i32
    %c0_i32_0 = arith.constant 0 : i32
    %2 = arith.cmpi ne, %1, %c0_i32_0 : i32
    scf.if %2 {
      %cst = arith.constant 0.000000e+00 : f32
      %22 = vector.broadcast %cst : f32 to vector<4x128xf32>
      %c0_17 = arith.constant 0 : index
      %c0_18 = arith.constant 0 : index
      %23 = vector.load %arg6[%c0_17, %c0_18] : memref<4x128xf32, #tpu.memory_space<vmem>>, vector<4x128xf32>
      tpu.vector_store %arg6[%c0_17, %c0_18], %22 {strides = array<i32>} : memref<4x128xf32, #tpu.memory_space<vmem>>, vector<4x128xf32>,
    } else {
    }
    %c0 = arith.constant 0 : index
    %c0_1 = arith.constant 0 : index
    %c0_2 = arith.constant 0 : index
    %3 = vector.load %arg3[%c0, %c0_1, %c0_2] : memref<1x4x256xf32, #tpu.memory_space<vmem>>, vector<1x4x128xf32>
    %4 = vector.shape_cast %3 : vector<1x4x128xf32> to vector<4x128xf32>
    %c0_3 = arith.constant 0 : index
    %c0_4 = arith.constant 0 : index
    %c0_5 = arith.constant 0 : index
    %5 = vector.load %arg4[%c0_3, %c0_4, %c0_5] : memref<1x1x256xf32, #tpu.memory_space<vmem>>, vector<1x1x128xf32>
    %6 = vector.shape_cast %5 : vector<1x1x128xf32> to vector<1x128xf32>
    %7 = vector.broadcast %6 : vector<1x128xf32> to vector<4x128xf32>
    %8 = arith.mulf %4, %7 : vector<4x128xf32>
    %c0_6 = arith.constant 0 : index
    %c0_7 = arith.constant 0 : index
    %c128 = arith.constant 128 : index
    %9 = vector.load %arg3[%c0_6, %c0_7, %c128] : memref<1x4x256xf32, #tpu.memory_space<vmem>>, vector<1x4x128xf32>
    %10 = vector.shape_cast %9 : vector<1x4x128xf32> to vector<4x128xf32>
    %c0_8 = arith.constant 0 : index
    %c0_9 = arith.constant 0 : index
    %c128_10 = arith.constant 128 : index
    %11 = vector.load %arg4[%c0_8, %c0_9, %c128_10] : memref<1x1x256xf32, #tpu.memory_space<vmem>>, vector<1x1x128xf32>
    %12 = vector.shape_cast %11 : vector<1x1x128xf32> to vector<1x128xf32>
    %13 = vector.broadcast %12 : vector<1x128xf32> to vector<4x128xf32>
    %14 = arith.mulf %10, %13 : vector<4x128xf32>
    %15 = arith.addf %8, %14 : vector<4x128xf32>
    %c0_11 = arith.constant 0 : index
    %c0_12 = arith.constant 0 : index
    %16 = vector.load %arg6[%c0_11, %c0_12] : memref<4x128xf32, #tpu.memory_space<vmem>>, vector<4x128xf32>
    %17 = arith.addf %16, %15 : vector<4x128xf32>
    %c0_13 = arith.constant 0 : index
    %c0_14 = arith.constant 0 : index
    %18 = vector.load %arg6[%c0_13, %c0_14] : memref<4x128xf32, #tpu.memory_space<vmem>>, vector<4x128xf32>
    tpu.vector_store %arg6[%c0_13, %c0_14], %17 {strides = array<i32>} : memref<4x128xf32, #tpu.memory_space<vmem>>, vector<4x128xf32>,
    %c0_i32_15 = arith.constant 0 : i32
    %19 = arith.cmpi eq, %arg2, %c0_i32_15 : i32
    %20 = arith.extui %19 : i1 to i32
    %c0_i32_16 = arith.constant 0 : i32
    %21 = arith.cmpi ne, %20, %c0_i32_16 : i32
    scf.if %21 {
      %c0_17 = arith.constant 0 : index
      %c0_18 = arith.constant 0 : index
      %22 = vector.load %arg6[%c0_17, %c0_18] : memref<4x128xf32, #tpu.memory_space<vmem>>, vector<4x128xf32>
      %cst = arith.constant dense<0.000000e+00> : vector<4xf32>
      %23 = vector.multi_reduction <add>, %22, %cst [1] : vector<4x128xf32> to vector<4xf32>
      %24 = vector.shape_cast %23 : vector<4xf32> to vector<4x1xf32>
      %c0_19 = arith.constant 0 : index
      %c0_20 = arith.constant 0 : index
      %c0_21 = arith.constant 0 : index
      %25 = vector.load %arg5[%c0_19, %c0_20, %c0_21] : memref<1x4x1xf32, #tpu.memory_space<vmem>>, vector<1x4x1xf32>
      %26 = vector.shape_cast %25 : vector<1x4x1xf32> to vector<4x1xf32>
      %27 = vector.shape_cast %24 : vector<4x1xf32> to vector<1x4x1xf32>
      tpu.vector_store %arg5[%c0_19, %c0_20, %c0_21], %27 {strides = array<i32>} : memref<1x4x1xf32, #tpu.memory_space<vmem>>, vector<1x4x1xf32>,
    } else {
    }
    return
  }
  func.func @transform_0(%arg0: i32, %arg1: i32, %arg2: i32) -> (i32, i32, i32) {
    %c0_i32 = arith.constant 0 : i32
    return %arg0, %arg1, %arg2 : i32, i32, i32
  }
  func.func @transform_1(%arg0: i32, %arg1: i32, %arg2: i32) -> (i32, i32, i32) {
    %c0_i32 = arith.constant 0 : i32
    %c0_i32_0 = arith.constant 0 : i32
    return %arg0, %c0_i32, %arg2 : i32, i32, i32
  }
  func.func @transform_2(%arg0: i32, %arg1: i32, %arg2: i32) -> (i32, i32, i32) {
    %c0_i32 = arith.constant 0 : i32
    %c0_i32_0 = arith.constant 0 : i32
    return %arg0, %arg1, %c0_i32 : i32, i32, i32
  }
}

</mosaic_0001>

<llo_original>
// kernel: tpu_custom_call.1
$region0: #{tpu_custom_call.1}
  #allocation0 [shape = 'u32[]', space=smem, size = 0x4, offset = 0x4, fixed_abs, tag = 'smem constant byte address 0x4 - core index']
  #allocation1 [shape = 'u32[72,128]{1,0:T(1,128)}', space=vmem, size = 0x9000, scoped, tag = 'internal scratch']
  #allocation2 [shape = 'f32[4,128]{1,0:T(4,128)}', space=vmem, size = 0x800, scoped, tag = 'scratch operand']
  %s0 = inlined_call_operand.hbm [shape: f32[2,4,256], index: 0, kind: input, shape index: {}]
  %s1 = inlined_call_operand.hbm [shape: f32[2,1,256], index: 1, kind: input, shape index: {}]
  %s2 = inlined_call_operand.vmem [shape: f32[2,4,1], index: 2, kind: output, shape index: {}]
  %s3 = sld [smem:[#allocation0]]
  $region57: #{tpu_custom_call.1} parent=0
    _
  %s5 = ssub.s32 1, %s3
  %s6 = scalar_select 0, %s5, %s3
  $region1: #{tpu_custom_call.1} parent=0
    #allocation3 [shape = 'u8[8192]{0}', space=vmem, size = 0x2000, scoped, tag = 'input window, operand 0']
    #allocation4 [shape = 's32[2]{0}', space=sflag, size = 0x8, scoped, tag = 'scoped memory for tpu_custom_call.1']
    #allocation5 [shape = 'u8[2048]{0}', space=vmem, size = 0x800, scoped, tag = 'input window, operand 1']
    #allocation6 [shape = 's32[2]{0}', space=sflag, size = 0x8, scoped, tag = 'scoped memory for tpu_custom_call.1']
    %7 = vsyncpa [#allocation4], 0
    %s8 = scalar_lea.sflag [#allocation4], 1
    %9 = vsyncpa %s8, 0
    %10 = vsyncpa [#allocation6], 0
    %s11 = scalar_lea.sflag [#allocation6], 1
    %12 = vsyncpa %s11, 0
    loop: start=0, step=1, limit=4
    $region2: #{tpu_custom_call.1} parent=1 // loop_pre_header
      _
    $region3: #{tpu_custom_call.1} parent=1 // loop_header
      %s14 = sphi 0, %s18
      %p15 = scmp.ge.s32.totalorder %s14, 4
      %s21 = sphi 0, %s40
      %s22 = sphi 0, %s36
      %s23 = sphi 0, %s32
      %s24 = sphi 0, %s21
      %s25 = sphi 0, %s22
      %s26 = sphi 0, %s23
      %s27 = sphi 0, %s24
      %s28 = sphi 0, %s25
      %s29 = sphi 0, %s26
      %s47 = sphi 0, %s49
      %s50 = sphi 0, %s47
      %s51 = sphi 0, %s50
      %s67 = sphi 0, %s51
      %s75 = sphi 0, %s77
      %s78 = sphi 0, %s75
      %s79 = sphi 0, %s78
      %s95 = sphi 0, %s79
      %s103 = sphi 0, %s105
      %s106 = sphi 0, %s103
      %s107 = sphi 0, %s106
      %s123 = sphi 0, %s107
    $region4: #{tpu_custom_call.1} parent=1 // loop_header_branch
      %17 = sbr.rel (%p15) target = $region8
    $region5: #{tpu_custom_call.1} parent=1 // loop_body
      %s19 = ssub.s32 %s14, 1
      %s20 = ssub.s32 %s14, 2
      %s30 = sadd.s32 1, %s23
      %p31 = scmp.ge.s32.totalorder %s30, 1
      %s32 = scalar_select %p31, 0, %s30
      %s33 = sadd.s32 1, %s22
      %s34 = scalar_select %p31, %s33, %s22
      %p35 = scmp.ge.s32.totalorder %s34, 1
      %s36 = scalar_select %p35, 0, %s34
      %s37 = sadd.s32 1, %s21
      %s38 = scalar_select %p35, %s37, %s21
      %p39 = scmp.ge.s32.totalorder %s38, 2
      %s40 = scalar_select %p39, 0, %s38
      %s41 = ssub.s32 %s21, %s40
      %s42 = ssub.s32 %s22, %s36
      %s43 = sor.u32 %s41, %s42
      %s44 = ssub.s32 %s23, %s32
      %s45 = sor.u32 %s43, %s44
      %p46 = scmp.eq.s32.totalorder %s45, 0
      %s48 = sadd.s32 %s47, 1
      %s49 = scalar_select %p46, %s47, %s48
      %p52 = pneg %p46
      %p53 = scmp.eq.s32.totalorder %s14, 1
      %p54 = por %p52, %p53
      %p55 = scmp.ne.s32.totalorder %s47, %s50
      %p56 = scmp.eq.s32.totalorder %s14, 0
      %p57 = por %p55, %p56
      %p58 = scmp.ne.s32.totalorder %s47, %s50
      %p59 = scmp.eq.s32.totalorder %s19, 1
      %p60 = por %p58, %p59
      %p61 = scmp.ne.s32.totalorder %s50, %s51
      %p62 = scmp.eq.s32.totalorder %s19, 0
      %p63 = por %p61, %p62
      %p64 = scmp.ne.s32.totalorder %s50, %s51
      %p65 = scmp.eq.s32.totalorder %s20, 1
      %p66 = por %p64, %p65
      %p68 = scmp.ne.s32.totalorder %s51, %s67
      %p69 = scmp.eq.s32.totalorder %s20, 0
      %p70 = por %p68, %p69
      %s71 = ssub.s32 %s21, %s40
      %s72 = ssub.s32 %s23, %s32
      %s73 = sor.u32 %s71, %s72
      %p74 = scmp.eq.s32.totalorder %s73, 0
      %s76 = sadd.s32 %s75, 1
      %s77 = scalar_select %p74, %s75, %s76
      %p80 = pneg %p74
      %p81 = scmp.eq.s32.totalorder %s14, 1
      %p82 = por %p80, %p81
      %p83 = scmp.ne.s32.totalorder %s75, %s78
      %p84 = scmp.eq.s32.totalorder %s14, 0
      %p85 = por %p83, %p84
      %p86 = scmp.ne.s32.totalorder %s75, %s78
      %p87 = scmp.eq.s32.totalorder %s19, 1
      %p88 = por %p86, %p87
      %p89 = scmp.ne.s32.totalorder %s78, %s79
      %p90 = scmp.eq.s32.totalorder %s19, 0
      %p91 = por %p89, %p90
      %p92 = scmp.ne.s32.totalorder %s78, %s79
      %p93 = scmp.eq.s32.totalorder %s20, 1
      %p94 = por %p92, %p93
      %p96 = scmp.ne.s32.totalorder %s79, %s95
      %p97 = scmp.eq.s32.totalorder %s20, 0
      %p98 = por %p96, %p97
      %s99 = ssub.s32 %s21, %s40
      %s100 = ssub.s32 %s22, %s36
      %s101 = sor.u32 %s99, %s100
      %p102 = scmp.eq.s32.totalorder %s101, 0
      %s104 = sadd.s32 %s103, 1
      %s105 = scalar_select %p102, %s103, %s104
      %p108 = pneg %p102
      %p109 = scmp.eq.s32.totalorder %s14, 1
      %p110 = por %p108, %p109
      %p111 = scmp.ne.s32.totalorder %s103, %s106
      %p112 = scmp.eq.s32.totalorder %s14, 0
      %p113 = por %p111, %p112
      %p114 = scmp.ne.s32.totalorder %s103, %s106
      %p115 = scmp.eq.s32.totalorder %s19, 1
      %p116 = por %p114, %p115
      %p117 = scmp.ne.s32.totalorder %s106, %s107
      %p118 = scmp.eq.s32.totalorder %s19, 0
      %p119 = por %p117, %p118
      %p120 = scmp.ne.s32.totalorder %s106, %s107
      %p121 = scmp.eq.s32.totalorder %s20, 1
      %p122 = por %p120, %p121
      %p124 = scmp.ne.s32.totalorder %s107, %s123
      %p125 = scmp.eq.s32.totalorder %s20, 0
      %p126 = por %p124, %p125
      %p127 = scmp.le.s32.totalorder 1, %s14
      %p128 = scmp.lt.s32.totalorder %s14, 3
      %p129 = pnand %p127, %p128
      %p130 = pneg %p129
      // Predicated region
      $region9: #{tpu_custom_call.1} parent=5 // pred_check
        _
      $region10: #{tpu_custom_call.1} parent=5 // pred_check_branch
        %132 = sbr.rel (%p129) target = $region12
      $region11: #{tpu_custom_call.1} parent=5 // pred_region
        %s133 = ssub.s32 %s14, 1
      $region12: #{tpu_custom_call.1} parent=5 // pred_fallthru
        _
      %p134 = scmp.lt.s32.totalorder %s14, 2
      // Predicated region
      $region13: #{tpu_custom_call.1} parent=5 // pred_check
        %p135 = pneg %p134
      $region14: #{tpu_custom_call.1} parent=5 // pred_check_branch
        %137 = sbr.rel (%p135) target = $region16
      $region15: #{tpu_custom_call.1} parent=5 // pred_region
        // Predicated region
        $region17: #{tpu_custom_call.1} parent=15 // pred_check
          %p138 = pneg %p57
        $region18: #{tpu_custom_call.1} parent=15 // pred_check_branch
          %140 = sbr.rel (%p138) target = $region20
        $region19: #{tpu_custom_call.1} parent=15 // pred_region
          %s141 = sand.u32 %s47, 1
          %s142 = scalar_lea.sflag [#allocation4], %s141
          %s143 = sand.u32 %s47, 1
          %s144 = smul.addr %s143, 8
          %s145 = scalar_lea.vmem [#allocation3], %s144
          %s146 = smul.u32 2, %s23
          %148 = vsyncadd %s142, 0
          %s149 = smul.addr %s22, 2
          %s150 = sadd.s32 %s146, %s149
          %s151 = smul.addr %s21, 2
          %s152 = sadd.s32 %s150, %s151
          %s153 = smul.addr %s152, 4
          %s154 = scalar_lea.hbm %s0, %s153
          %s156 = sshll.u32 %s154, 4
          %s157 = int_to_ptr.hbm [resolvable:$true] %s156
          %s158 = sshll.u32 %s145, 4
          %s159 = int_to_ptr.vmem [resolvable:$true] %s158
          %161 = dma.hbm_to_vmem [thread:$0]  %s157, 128, %s159, %s142
        $region20: #{tpu_custom_call.1} parent=15 // pred_fallthru
          _
        // Predicated region
        $region21: #{tpu_custom_call.1} parent=15 // pred_check
          %p162 = pneg %p85
        $region22: #{tpu_custom_call.1} parent=15 // pred_check_branch
          %164 = sbr.rel (%p162) target = $region24
        $region23: #{tpu_custom_call.1} parent=15 // pred_region
          %s165 = sand.u32 %s75, 1
          %s166 = scalar_lea.sflag [#allocation6], %s165
          %s167 = sand.u32 %s75, 1
          %s168 = smul.addr %s167, 2
          %s169 = scalar_lea.vmem [#allocation5], %s168
          %s170 = smul.u32 2, %s23
          %172 = vsyncadd %s166, 0
          %s173 = smul.addr %s21, 2
          %s174 = sadd.s32 %s170, %s173
          %s175 = scalar_lea.hbm %s1, %s174
          %s177 = sshll.u32 %s175, 4
          %s178 = int_to_ptr.hbm [resolvable:$true] %s177
          %s179 = sshll.u32 %s169, 4
          %s180 = int_to_ptr.vmem [resolvable:$true] %s179
          %182 = dma.hbm_to_vmem [thread:$0]  %s178, 32, %s180, %s166
        $region24: #{tpu_custom_call.1} parent=15 // pred_fallthru
          _
      $region16: #{tpu_custom_call.1} parent=5 // pred_fallthru
        _
      %p183 = scmp.le.s32.totalorder 1, %s14
      %p184 = scmp.lt.s32.totalorder %s14, 3
      %p185 = pnand %p183, %p184
      %p186 = pneg %p185
      // Predicated region
      $region25: #{tpu_custom_call.1} parent=5 // pred_check
        _
      $region26: #{tpu_custom_call.1} parent=5 // pred_check_branch
        %188 = sbr.rel (%p185) target = $region28
      $region27: #{tpu_custom_call.1} parent=5 // pred_region
        %s189 = ssub.s32 %s14, 1
        %s190 = sand.u32 %s50, 1
        %s191 = scalar_lea.sflag [#allocation4], %s190
        %s192 = sand.u32 %s50, 1
        %s193 = smul.addr %s192, 8
        %s194 = scalar_lea.vmem [#allocation3], %s193
        // Predicated region
        $region29: #{tpu_custom_call.1} parent=27 // pred_check
          %p195 = pneg %p63
        $region30: #{tpu_custom_call.1} parent=27 // pred_check_branch
          %197 = sbr.rel (%p195) target = $region32
        $region31: #{tpu_custom_call.1} parent=27 // pred_region
          %199 = dma.done %s191, 128
        $region32: #{tpu_custom_call.1} parent=27 // pred_fallthru
          _
        %s200 = sand.u32 %s78, 1
        %s201 = scalar_lea.sflag [#allocation6], %s200
        %s202 = sand.u32 %s78, 1
        %s203 = smul.addr %s202, 2
        %s204 = scalar_lea.vmem [#allocation5], %s203
        // Predicated region
        $region33: #{tpu_custom_call.1} parent=27 // pred_check
          %p205 = pneg %p91
        $region34: #{tpu_custom_call.1} parent=27 // pred_check_branch
          %207 = sbr.rel (%p205) target = $region36
        $region35: #{tpu_custom_call.1} parent=27 // pred_region
          %209 = dma.done %s201, 32
        $region36: #{tpu_custom_call.1} parent=27 // pred_fallthru
          _
        %s210 = sand.u32 %s50, 1
        %s211 = scalar_lea.sflag [#allocation4], %s210
        %s212 = sand.u32 %s50, 1
        %s213 = smul.addr %s212, 8
        %s214 = scalar_lea.vmem [#allocation3], %s213
        %p215 = pneg %p63
        %p216 = pneg %p60
        %s217 = sand.u32 %s78, 1
        %s218 = scalar_lea.sflag [#allocation6], %s217
        %s219 = sand.u32 %s78, 1
        %s220 = smul.addr %s219, 2
        %s221 = scalar_lea.vmem [#allocation5], %s220
        %p222 = pneg %p91
        %p223 = pneg %p88
        %p224 = pneg %p119
        %p225 = pneg %p116
        %p226 = scmp.lt.s32.totalorder %s24, 1
        %s227 = scalar_select %p226, %s24, 1
        %p228 = scmp.lt.s32.totalorder %s25, 0
        %s229 = scalar_select %p228, %s25, 0
        %s230 = sadd.s32 %s229, %s227
        %s231 = smul.addr %s230, 4
        %s232 = scalar_lea.vmem %s2, %s231
        %s233 = smul.u32 2, %s26
        %s234 = smul.u32 2, %s26
        %p235 = scmp.lt.s32.totalorder %s24, 1
        %s236 = scalar_select %p235, %s24, 1
        %p237 = scmp.lt.s32.totalorder %s25, 0
        %s238 = scalar_select %p237, %s25, 0
        %s239 = sadd.s32 %s238, %s236
        %s240 = smul.addr %s239, 4
        %s241 = scalar_lea.vmem %s2, %s240
        %p242 = scmp.eq.s32.totalorder %s26, 0
        // Predicated region
        $region37: #{tpu_custom_call.1} parent=27 // pred_check
          %p243 = pneg %p242
        $region38: #{tpu_custom_call.1} parent=27 // pred_check_branch
          %245 = sbr.rel (%p243) target = $region40
        $region39: #{tpu_custom_call.1} parent=27 // pred_region
          %246 = vst [vmem:[#allocation2] sm:$0xf] 0.0
        $region40: #{tpu_custom_call.1} parent=27 // pred_fallthru
          _
        %v247 = vld [vmem:[%s194] sm:$0xf]
        %v248 = vld [vmem:[%s204] sm:$0x1]
        %v250 = vperm.slane %v248, 0
        %v252 = vmul.f32 %v247, %v250
        %v253 = vld [vmem:[%s194 + $0x4] sm:$0xf]
        %v254 = vld [vmem:[%s204 + $0x1] sm:$0x1]
        %v256 = vperm.slane %v254, 0
        %v258 = vmul.f32 %v253, %v256
        %v259 = vadd.f32 %v252, %v258
        %v260 = vld [vmem:[#allocation2] sm:$0xf]
        %v261 = vadd.f32 %v260, %v259
        %262 = vst [vmem:[#allocation2] sm:$0xf] %v261
        // Predicated region
        $region41: #{tpu_custom_call.1} parent=27 // pred_check
          %p263 = pneg %p242
        $region42: #{tpu_custom_call.1} parent=27 // pred_check_branch
          %265 = sbr.rel (%p263) target = $region44
        $region43: #{tpu_custom_call.1} parent=27 // pred_region
          %v266 = vld [vmem:[#allocation2] sm:$0xf]
          %vm267 = vcmask 1043456
          %v268 = vsel %vm267, %v266, 0.0
          %269 = vadd.xlane.f32.xlu0 %v268
          %v270 = vpop.xlane.xlu0 %269
          %vm271 = vcmask 3072
          %272 = vst.msk [vmem:[%s241] sm:$0xf] %vm271, %v270
        $region44: #{tpu_custom_call.1} parent=27 // pred_fallthru
          _
        %p273 = scmp.lt.s32.totalorder %s24, 1
        %s274 = scalar_select %p273, %s24, 1
        %p275 = scmp.lt.s32.totalorder %s25, 0
        %s276 = scalar_select %p275, %s25, 0
        %s277 = sadd.s32 %s276, %s274
        %s278 = smul.addr %s277, 4
        %s279 = scalar_lea.vmem %s2, %s278
        // Predicated region
        $region45: #{tpu_custom_call.1} parent=27 // pred_check
          %p280 = pneg %p116
        $region46: #{tpu_custom_call.1} parent=27 // pred_check_branch
          %282 = sbr.rel (%p280) target = $region48
        $region47: #{tpu_custom_call.1} parent=27 // pred_region
          _
        $region48: #{tpu_custom_call.1} parent=27 // pred_fallthru
          _
      $region28: #{tpu_custom_call.1} parent=5 // pred_fallthru
        _
      %p283 = scmp.le.s32.totalorder 2, %s14
      // Predicated region
      $region49: #{tpu_custom_call.1} parent=5 // pred_check
        %p284 = pneg %p283
      $region50: #{tpu_custom_call.1} parent=5 // pred_check_branch
        %286 = sbr.rel (%p284) target = $region52
      $region51: #{tpu_custom_call.1} parent=5 // pred_region
        %s287 = ssub.s32 %s14, 2
        // Predicated region
        $region53: #{tpu_custom_call.1} parent=51 // pred_check
          %p288 = pneg %p122
        $region54: #{tpu_custom_call.1} parent=51 // pred_check_branch
          %290 = sbr.rel (%p288) target = $region56
        $region55: #{tpu_custom_call.1} parent=51 // pred_region
          %p291 = scmp.lt.s32.totalorder %s27, 1
          %s292 = scalar_select %p291, %s27, 1
          %p293 = scmp.lt.s32.totalorder %s28, 0
          %s294 = scalar_select %p293, %s28, 0
          %s295 = sadd.s32 %s294, %s292
          %s296 = smul.addr %s295, 4
          %s297 = scalar_lea.vmem %s2, %s296
        $region56: #{tpu_custom_call.1} parent=51 // pred_fallthru
          _
      $region52: #{tpu_custom_call.1} parent=5 // pred_fallthru
        _
    $region6: #{tpu_custom_call.1} parent=1 // loop_footer
      %s18 = sadd.s32 1, %s14
    $region7: #{tpu_custom_call.1} parent=1 // loop_footer_branch
      %13 = sbr.rel target = $region3
    $region8: #{tpu_custom_call.1} parent=1 // loop_exit
      _
    %298 = vsyncpa [#allocation4], 1
    %s299 = scalar_lea.sflag [#allocation4], 1
    %300 = vsyncpa %s299, 1
    %301 = vsyncpa [#allocation6], 1
    %s302 = scalar_lea.sflag [#allocation6], 1
    %303 = vsyncpa %s302, 1

</llo_original>
